<compile_context>
chip_gen: v6e
topology: v6e:2x2x1
jax: 0.10.0
libtpu: 0.0.40
codegen_flags: <defaults>
</compile_context>

<pallas_src>
import functools
import math

import jax
import jax.numpy as jnp
from jax.experimental import pallas as pl
from jax.experimental.pallas import tpu as pltpu

LANE = 128        # lane width — pad all stored feature dims to a multiple
STATS_SUB = 8     # per-tile stats slab is (1, 8, 128): lane-dense unmasked vst


def _round_up(n, m):
    return ((n + m - 1) // m) * m


# ---------------------------------------------------------------------------
# Fused Pallas kernel: all linears + ReLUs + softmax/CE/argmax head
# ---------------------------------------------------------------------------
def _mlp_fused_kernel(*refs, num_layers, num_classes):
    # ref layout: x, (w, b) * num_layers, lab | pout_packed, stats
    x_ref = refs[0]
    wb_refs = refs[1:1 + 2 * num_layers]
    lab_ref = refs[1 + 2 * num_layers]
    pout_ref, stats_ref = refs[2 + 2 * num_layers:]

    # ---- MLP trunk: Linear (+ ReLU on hidden layers); bf16 MXU, f32 acc ----
    h = x_ref[...]
    for li in range(num_layers):
        w_ref = wb_refs[2 * li]
        b_ref = wb_refs[2 * li + 1]
        h = jnp.dot(h.astype(w_ref.dtype), w_ref[...],
                    preferred_element_type=jnp.float32)
        h = h + b_ref[...]                       # (1, out_p) broadcasts, f32
        if li < num_layers - 1:
            h = jnp.maximum(h, 0.0)              # ReLU (dropout = identity)
    logits = h                                   # (bt, Cp) f32, padded classes

    bt, cp = logits.shape
    lane = jax.lax.broadcasted_iota(jnp.int32, (bt, cp), 1)
    valid = lane < num_classes
    logits = jnp.where(valid, logits, jnp.float32(-1e30))  # mask padded lanes

    # ---- log_softmax (numerically stable, padded lanes excluded), f32 ------
    m = jnp.max(logits, axis=1, keepdims=True)
    z = logits - m
    ez = jnp.where(valid, jnp.exp(z), 0.0)
    lse = jnp.log(jnp.sum(ez, axis=1, keepdims=True))
    pout = z - lse                               # (bt, Cp)

    # ---- argmax (first max index, like torch.max(dim=1)) -------------------
    is_max = jnp.logical_and(logits == m, valid)
    pred = jnp.min(jnp.where(is_max, lane, cp), axis=1, keepdims=True)  # (bt,1)

    # ---- per-tile cross-entropy sum + error count ---------------------------
    lab = lab_ref[...]                           # (bt, 1) int32
    onehot = (lane == lab).astype(jnp.float32)
    nll_sum = -jnp.sum(jnp.where(valid, pout, 0.0) * onehot)
    err_sum = jnp.sum((pred != lab).astype(jnp.float32))

    # ---- single lane-dense output slab: log-softmax + packed pred ----------
    # Valid lanes hold pout; lane `num_classes` carries pred bit-cast i32->f32
    # (selects preserve bits), so no separate (B, 128) int32 output is needed.
    packed = jnp.where(valid, pout, 0.0)
    pred_f32 = pltpu.bitcast(pred, jnp.float32)
    packed = jnp.where(lane == num_classes, pred_f32, packed)
    pout_ref[...] = packed

    # ---- per-tile stats slab (1, 8, 128): lane0 = CE sum, lane1 = err count -
    ln = jax.lax.broadcasted_iota(jnp.int32, stats_ref.shape, 2)
    stats_ref[...] = jnp.where(ln == 0, nll_sum,
                               jnp.where(ln == 1, err_sum, 0.0))


# ---------------------------------------------------------------------------
# MLP parameters: PyTorch-style init, pre-transposed + lane-padded + bf16
# ---------------------------------------------------------------------------
def init_mlp_params(key, input_dim, hidden_dims, num_classes,
                    weight_dtype=jnp.bfloat16):
    """Returns [(w_pad (in_p, out_p) weight_dtype, b_pad (1, out_p) f32), ...]."""
    params = []
    dims_in = [input_dim] + hidden_dims[:-1]
    for d_in, d_out in zip(dims_in, hidden_dims):
        key, sub = jax.random.split(key)
        bound = (0.01 / (d_in + d_out)) ** 0.5
        w = jax.random.uniform(sub, (d_out, d_in), jnp.float32, -bound, bound)
        in_p = _round_up(d_in, LANE)
        out_p = _round_up(d_out, LANE)
        w_pad = jnp.zeros((in_p, out_p), jnp.float32).at[:d_in, :d_out].set(w.T)
        b_pad = jnp.zeros((1, out_p), jnp.float32)   # PyTorch init: zero bias
        params.append((w_pad.astype(weight_dtype), b_pad))
    # output layer: zero weights and zero bias (as in the PyTorch module)
    d_in = hidden_dims[-1]
    in_p = _round_up(d_in, LANE)
    out_p = _round_up(num_classes, LANE)
    params.append((jnp.zeros((in_p, out_p), weight_dtype),
                   jnp.zeros((1, out_p), jnp.float32)))
    return params


# ---------------------------------------------------------------------------
# Wrapper: single fused pallas_call, 1-D *parallel* grid over batch tiles
# ---------------------------------------------------------------------------
def mlp_forward(params, x, lab, num_classes, batch_tile=1024):
    num_layers = len(params)
    B, K = x.shape
    in0_p = params[0][0].shape[0]
    Cp = params[-1][0].shape[1]
    assert num_classes < Cp, "need one spare padded lane to carry packed pred"

    bt = min(batch_tile, B)
    assert B % bt == 0, "batch must be divisible by the batch tile"
    num_tiles = B // bt

    # Lane-dense input block (zero rows already exist in layer-0 weights).
    x_p = x if K == in0_p else jnp.pad(x, ((0, 0), (0, in0_p - K)))
    lab2 = lab.astype(jnp.int32).reshape(B, 1)

    in_specs = [pl.BlockSpec((bt, in0_p), lambda i: (i, 0))]
    flat_args = [x_p]
    for w, b in params:
        in_specs.append(pl.BlockSpec(w.shape, lambda i: (0, 0)))  # VMEM-resident
        in_specs.append(pl.BlockSpec(b.shape, lambda i: (0, 0)))
        flat_args.extend((w, b))
    in_specs.append(pl.BlockSpec((bt, 1), lambda i: (i, 0)))
    flat_args.append(lab2)

    kernel = functools.partial(
        _mlp_fused_kernel, num_layers=num_layers, num_classes=num_classes)

    pout_p, stats = pl.pallas_call(
        kernel,
        out_shape=(
            jax.ShapeDtypeStruct((B, Cp), jnp.float32),
            jax.ShapeDtypeStruct((num_tiles, STATS_SUB, LANE), jnp.float32),
        ),
        grid=(num_tiles,),
        in_specs=in_specs,
        out_specs=(
            pl.BlockSpec((bt, Cp), lambda i: (i, 0)),
            pl.BlockSpec((1, STATS_SUB, LANE), lambda i: (i, 0, 0)),
        ),
        compiler_params=pltpu.CompilerParams(
            dimension_semantics=("parallel",),      # shards batch tiles on v7x's 2 TCs
            vmem_limit_bytes=32 * 1024 * 1024,
        ),
    )(*flat_args)

    # Glue: reduce per-tile stats, strip lane padding, unpack pred bits.
    loss = jnp.sum(stats[:, 0, 0]) / jnp.float32(B)
    err = jnp.sum(stats[:, 0, 1])
    pout = pout_p[:, :num_classes]
    pred = jax.lax.bitcast_convert_type(pout_p[:, num_classes], jnp.int32)
    return loss, err, pout, pred


# ---------------------------------------------------------------------------
if __name__ == "__main__":
    key = jax.random.PRNGKey(0)

    batch = 8
    input_dim = 32
    hidden_dims = [64, 64]
    num_classes = 16

    kx, klab, kparams = jax.random.split(key, 3)
    x = jax.random.normal(kx, (batch, input_dim), jnp.float32)
    lab = jax.random.randint(klab, (batch,), 0, num_classes, jnp.int32)

    params = init_mlp_params(kparams, input_dim, hidden_dims, num_classes)

    loss, err, pout, pred = mlp_forward(params, x, lab, num_classes)
    jax.block_until_ready((loss, err, pout, pred))

    assert pout.shape == (batch, num_classes)
    assert pred.shape == (batch,)
    # Sanity: the output layer is zero-initialized -> all logits are 0, so
    # pout = -log(C), loss = log(C), pred = 0 (first-max), err = #(lab != 0).
    assert abs(float(loss) - math.log(num_classes)) < 1e-3
    assert abs(float(err) - float(jnp.sum(lab != 0))) < 1e-3
    assert int(jnp.sum(pred)) == 0
    print("KERNEL_OK")
</pallas_src>

<mosaic_0001>
module attributes {stable_mosaic.version = 11 : i64} {
  func.func @_mlp_fused_kernel(%arg0: i32, %arg1: memref<8x128xf32, #tpu.memory_space<vmem>>, %arg2: memref<128x128xbf16, #tpu.memory_space<vmem>>, %arg3: memref<1x128xf32, #tpu.memory_space<vmem>>, %arg4: memref<128x128xbf16, #tpu.memory_space<vmem>>, %arg5: memref<1x128xf32, #tpu.memory_space<vmem>>, %arg6: memref<128x128xbf16, #tpu.memory_space<vmem>>, %arg7: memref<1x128xf32, #tpu.memory_space<vmem>>, %arg8: memref<8x1xi32, #tpu.memory_space<vmem>>, %arg9: memref<8x128xf32, #tpu.memory_space<vmem>>, %arg10: memref<1x8x128xf32, #tpu.memory_space<vmem>>) attributes {dimension_semantics = [#tpu.dimension_semantics<parallel>], iteration_bounds = array<i64: 1>, scalar_prefetch = 0 : i64, scratch_operands = 0 : i64, tpu.core_type = #tpu.core_type<tc>, window_params = [{transform_indices = @transform_0, window_bounds = array<i64: 8, 128>}, {pipeline_mode = #tpu.pipeline_mode<synchronous>, transform_indices = @transform_1, window_bounds = array<i64: 128, 128>}, {pipeline_mode = #tpu.pipeline_mode<synchronous>, transform_indices = @transform_2, window_bounds = array<i64: 1, 128>}, {pipeline_mode = #tpu.pipeline_mode<synchronous>, transform_indices = @transform_3, window_bounds = array<i64: 128, 128>}, {pipeline_mode = #tpu.pipeline_mode<synchronous>, transform_indices = @transform_4, window_bounds = array<i64: 1, 128>}, {pipeline_mode = #tpu.pipeline_mode<synchronous>, transform_indices = @transform_5, window_bounds = array<i64: 128, 128>}, {pipeline_mode = #tpu.pipeline_mode<synchronous>, transform_indices = @transform_6, window_bounds = array<i64: 1, 128>}, {transform_indices = @transform_7, window_bounds = array<i64: 8, 1>}, {transform_indices = @transform_8, window_bounds = array<i64: 8, 128>}, {transform_indices = @transform_9, window_bounds = array<i64: 1, 8, 128>}]} {
    %c0 = arith.constant 0 : index
    %c0_0 = arith.constant 0 : index
    %0 = vector.load %arg1[%c0, %c0_0] : memref<8x128xf32, #tpu.memory_space<vmem>>, vector<8x128xf32>
    %1 = arith.truncf %0 : vector<8x128xf32> to vector<8x128xbf16>
    %c0_1 = arith.constant 0 : index
    %c0_2 = arith.constant 0 : index
    %2 = vector.load %arg2[%c0_1, %c0_2] : memref<128x128xbf16, #tpu.memory_space<vmem>>, vector<128x128xbf16>
    %cst = arith.constant dense<0.000000e+00> : vector<8x128xf32>
    %3 = tpu.matmul %1, %2, %cst {dimension_numbers = #tpu.dot_dimension_numbers<[1], [0], [0], [1], [0, 0, 1, 1], [], []>} : vector<8x128xbf16>, vector<128x128xbf16>, vector<8x128xf32> -> vector<8x128xf32>
    %c0_3 = arith.constant 0 : index
    %c0_4 = arith.constant 0 : index
    %4 = vector.load %arg3[%c0_3, %c0_4] : memref<1x128xf32, #tpu.memory_space<vmem>>, vector<1x128xf32>
    %5 = vector.broadcast %4 : vector<1x128xf32> to vector<8x128xf32>
    %6 = arith.addf %3, %5 : vector<8x128xf32>
    %cst_5 = arith.constant 0.000000e+00 : f32
    %7 = vector.broadcast %cst_5 : f32 to vector<8x128xf32>
    %8 = arith.maximumf %6, %7 : vector<8x128xf32>
    %9 = arith.truncf %8 : vector<8x128xf32> to vector<8x128xbf16>
    %c0_6 = arith.constant 0 : index
    %c0_7 = arith.constant 0 : index
    %10 = vector.load %arg4[%c0_6, %c0_7] : memref<128x128xbf16, #tpu.memory_space<vmem>>, vector<128x128xbf16>
    %cst_8 = arith.constant dense<0.000000e+00> : vector<8x128xf32>
    %11 = tpu.matmul %9, %10, %cst_8 {dimension_numbers = #tpu.dot_dimension_numbers<[1], [0], [0], [1], [0, 0, 1, 1], [], []>} : vector<8x128xbf16>, vector<128x128xbf16>, vector<8x128xf32> -> vector<8x128xf32>
    %c0_9 = arith.constant 0 : index
    %c0_10 = arith.constant 0 : index
    %12 = vector.load %arg5[%c0_9, %c0_10] : memref<1x128xf32, #tpu.memory_space<vmem>>, vector<1x128xf32>
    %13 = vector.broadcast %12 : vector<1x128xf32> to vector<8x128xf32>
    %14 = arith.addf %11, %13 : vector<8x128xf32>
    %cst_11 = arith.constant 0.000000e+00 : f32
    %15 = vector.broadcast %cst_11 : f32 to vector<8x128xf32>
    %16 = arith.maximumf %14, %15 : vector<8x128xf32>
    %17 = arith.truncf %16 : vector<8x128xf32> to vector<8x128xbf16>
    %c0_12 = arith.constant 0 : index
    %c0_13 = arith.constant 0 : index
    %18 = vector.load %arg6[%c0_12, %c0_13] : memref<128x128xbf16, #tpu.memory_space<vmem>>, vector<128x128xbf16>
    %cst_14 = arith.constant dense<0.000000e+00> : vector<8x128xf32>
    %19 = tpu.matmul %17, %18, %cst_14 {dimension_numbers = #tpu.dot_dimension_numbers<[1], [0], [0], [1], [0, 0, 1, 1], [], []>} : vector<8x128xbf16>, vector<128x128xbf16>, vector<8x128xf32> -> vector<8x128xf32>
    %c0_15 = arith.constant 0 : index
    %c0_16 = arith.constant 0 : index
    %20 = vector.load %arg7[%c0_15, %c0_16] : memref<1x128xf32, #tpu.memory_space<vmem>>, vector<1x128xf32>
    %21 = vector.broadcast %20 : vector<1x128xf32> to vector<8x128xf32>
    %22 = arith.addf %19, %21 : vector<8x128xf32>
    %23 = tpu.iota {dimensions = array<i32: 1>} : vector<8x128xi32>
    %c16_i32 = arith.constant 16 : i32
    %24 = vector.broadcast %c16_i32 : i32 to vector<8x128xi32>
    %25 = arith.cmpi slt, %23, %24 : vector<8x128xi32>
    %cst_17 = arith.constant -1.000000e+30 : f32
    %26 = vector.broadcast %cst_17 : f32 to vector<8x128xf32>
    %27 = arith.select %25, %22, %26 : vector<8x128xi1>, vector<8x128xf32>
    %cst_18 = arith.constant dense<0xFF800000> : vector<8xf32>
    %28 = vector.multi_reduction <maximumf>, %27, %cst_18 [1] : vector<8x128xf32> to vector<8xf32>
    %29 = vector.shape_cast %28 : vector<8xf32> to vector<8x1xf32>
    %30 = vector.broadcast %29 : vector<8x1xf32> to vector<8x128xf32>
    %31 = arith.subf %27, %30 : vector<8x128xf32>
    %32 = math.exp %31 : vector<8x128xf32>
    %cst_19 = arith.constant 0.000000e+00 : f32
    %33 = vector.broadcast %cst_19 : f32 to vector<8x128xf32>
    %34 = arith.select %25, %32, %33 : vector<8x128xi1>, vector<8x128xf32>
    %cst_20 = arith.constant dense<0.000000e+00> : vector<8xf32>
    %35 = vector.multi_reduction <add>, %34, %cst_20 [1] : vector<8x128xf32> to vector<8xf32>
    %36 = vector.shape_cast %35 : vector<8xf32> to vector<8x1xf32>
    %37 = math.log %36 : vector<8x1xf32>
    %38 = vector.broadcast %37 : vector<8x1xf32> to vector<8x128xf32>
    %39 = arith.subf %31, %38 : vector<8x128xf32>
    %40 = vector.broadcast %29 : vector<8x1xf32> to vector<8x128xf32>
    %41 = arith.cmpf oeq, %27, %40 : vector<8x128xf32>
    %42 = arith.andi %41, %25 : vector<8x128xi1>
    %c128_i32 = arith.constant 128 : i32
    %43 = vector.broadcast %c128_i32 : i32 to vector<8x128xi32>
    %44 = arith.select %42, %23, %43 : vector<8x128xi1>, vector<8x128xi32>
    %cst_21 = arith.constant dense<2147483647> : vector<8xi32>
    %45 = vector.multi_reduction <minsi>, %44, %cst_21 [1] : vector<8x128xi32> to vector<8xi32>
    %46 = vector.shape_cast %45 : vector<8xi32> to vector<8x1xi32>
    %c0_22 = arith.constant 0 : index
    %c0_23 = arith.constant 0 : index
    %47 = vector.load %arg8[%c0_22, %c0_23] : memref<8x1xi32, #tpu.memory_space<vmem>>, vector<8x1xi32>
    %48 = vector.broadcast %47 : vector<8x1xi32> to vector<8x128xi32>
    %49 = arith.cmpi eq, %23, %48 : vector<8x128xi32>
    %50 = arith.extui %49 : vector<8x128xi1> to vector<8x128xi32>
    %51 = arith.sitofp %50 : vector<8x128xi32> to vector<8x128xf32>
    %cst_24 = arith.constant 0.000000e+00 : f32
    %52 = vector.broadcast %cst_24 : f32 to vector<8x128xf32>
    %53 = arith.select %25, %39, %52 : vector<8x128xi1>, vector<8x128xf32>
    %54 = arith.mulf %53, %51 : vector<8x128xf32>
    %55 = vector.shape_cast %54 : vector<8x128xf32> to vector<1x8x128xf32>
    %cst_25 = arith.constant dense<0.000000e+00> : vector<1xf32>
    %56 = vector.multi_reduction <add>, %55, %cst_25 [1, 2] : vector<1x8x128xf32> to vector<1xf32>
    %57 = vector.shape_cast %56 : vector<1xf32> to vector<1x1x1xf32>
    %58 = vector.extract %57[0, 0, 0] : f32 from vector<1x1x1xf32>
    %cst_26 = arith.constant 0.000000e+00 : f32
    %59 = arith.subf %cst_26, %58 : f32
    %60 = arith.cmpi ne, %46, %47 : vector<8x1xi32>
    %61 = arith.extui %60 : vector<8x1xi1> to vector<8x1xi32>
    %62 = arith.sitofp %61 : vector<8x1xi32> to vector<8x1xf32>
    %63 = vector.shape_cast %62 : vector<8x1xf32> to vector<1x8x1xf32>
    %cst_27 = arith.constant dense<0.000000e+00> : vector<1xf32>
    %64 = vector.multi_reduction <add>, %63, %cst_27 [1, 2] : vector<1x8x1xf32> to vector<1xf32>
    %65 = vector.shape_cast %64 : vector<1xf32> to vector<1x1x1xf32>
    %66 = vector.extract %65[0, 0, 0] : f32 from vector<1x1x1xf32>
    %cst_28 = arith.constant 0.000000e+00 : f32
    %67 = vector.broadcast %cst_28 : f32 to vector<8x128xf32>
    %68 = arith.select %25, %39, %67 : vector<8x128xi1>, vector<8x128xf32>
    %69 = tpu.bitcast %46 : vector<8x1xi32> -> vector<8x1xf32>
    %c16_i32_29 = arith.constant 16 : i32
    %70 = vector.broadcast %c16_i32_29 : i32 to vector<8x128xi32>
    %71 = arith.cmpi eq, %23, %70 : vector<8x128xi32>
    %72 = vector.shape_cast %69 : vector<8x1xf32> to vector<8x1xf32>
    %73 = vector.broadcast %72 : vector<8x1xf32> to vector<8x128xf32>
    %74 = arith.select %71, %73, %68 : vector<8x128xi1>, vector<8x128xf32>
    %c0_30 = arith.constant 0 : index
    %c0_31 = arith.constant 0 : index
    %75 = vector.load %arg9[%c0_30, %c0_31] : memref<8x128xf32, #tpu.memory_space<vmem>>, vector<8x128xf32>
    tpu.vector_store %arg9[%c0_30, %c0_31], %74 {strides = array<i32>} : memref<8x128xf32, #tpu.memory_space<vmem>>, vector<8x128xf32>,
    %76 = tpu.iota {dimensions = array<i32: 2>} : vector<1x8x128xi32>
    %c0_i32 = arith.constant 0 : i32
    %77 = vector.broadcast %c0_i32 : i32 to vector<1x8x128xi32>
    %78 = arith.cmpi eq, %76, %77 : vector<1x8x128xi32>
    %c1_i32 = arith.constant 1 : i32
    %79 = vector.broadcast %c1_i32 : i32 to vector<1x8x128xi32>
    %80 = arith.cmpi eq, %76, %79 : vector<1x8x128xi32>
    %cst_32 = arith.constant 0.000000e+00 : f32
    %81 = vector.broadcast %66 : f32 to vector<1x8x128xf32>
    %82 = vector.broadcast %cst_32 : f32 to vector<1x8x128xf32>
    %83 = arith.select %80, %81, %82 : vector<1x8x128xi1>, vector<1x8x128xf32>
    %84 = vector.broadcast %59 : f32 to vector<1x8x128xf32>
    %85 = arith.select %78, %84, %83 : vector<1x8x128xi1>, vector<1x8x128xf32>
    %c0_33 = arith.constant 0 : index
    %c0_34 = arith.constant 0 : index
    %c0_35 = arith.constant 0 : index
    %86 = vector.load %arg10[%c0_33, %c0_34, %c0_35] : memref<1x8x128xf32, #tpu.memory_space<vmem>>, vector<1x8x128xf32>
    tpu.vector_store %arg10[%c0_33, %c0_34, %c0_35], %85 {strides = array<i32>} : memref<1x8x128xf32, #tpu.memory_space<vmem>>, vector<1x8x128xf32>,
    return
  }
  func.func @transform_0(%arg0: i32) -> (i32, i32) {
    %c0_i32 = arith.constant 0 : i32
    %c0_i32_0 = arith.constant 0 : i32
    return %arg0, %c0_i32 : i32, i32
  }
  func.func @transform_1(%arg0: i32) -> (i32, i32) {
    %c0_i32 = arith.constant 0 : i32
    %c0_i32_0 = arith.constant 0 : i32
    %c0_i32_1 = arith.constant 0 : i32
    return %c0_i32, %c0_i32_0 : i32, i32
  }
  func.func @transform_2(%arg0: i32) -> (i32, i32) {
    %c0_i32 = arith.constant 0 : i32
    %c0_i32_0 = arith.constant 0 : i32
    %c0_i32_1 = arith.constant 0 : i32
    return %c0_i32, %c0_i32_0 : i32, i32
  }
  func.func @transform_3(%arg0: i32) -> (i32, i32) {
    %c0_i32 = arith.constant 0 : i32
    %c0_i32_0 = arith.constant 0 : i32
    %c0_i32_1 = arith.constant 0 : i32
    return %c0_i32, %c0_i32_0 : i32, i32
  }
  func.func @transform_4(%arg0: i32) -> (i32, i32) {
    %c0_i32 = arith.constant 0 : i32
    %c0_i32_0 = arith.constant 0 : i32
    %c0_i32_1 = arith.constant 0 : i32
    return %c0_i32, %c0_i32_0 : i32, i32
  }
  func.func @transform_5(%arg0: i32) -> (i32, i32) {
    %c0_i32 = arith.constant 0 : i32
    %c0_i32_0 = arith.constant 0 : i32
    %c0_i32_1 = arith.constant 0 : i32
    return %c0_i32, %c0_i32_0 : i32, i32
  }
  func.func @transform_6(%arg0: i32) -> (i32, i32) {
    %c0_i32 = arith.constant 0 : i32
    %c0_i32_0 = arith.constant 0 : i32
    %c0_i32_1 = arith.constant 0 : i32
    return %c0_i32, %c0_i32_0 : i32, i32
  }
  func.func @transform_7(%arg0: i32) -> (i32, i32) {
    %c0_i32 = arith.constant 0 : i32
    %c0_i32_0 = arith.constant 0 : i32
    return %arg0, %c0_i32 : i32, i32
  }
  func.func @transform_8(%arg0: i32) -> (i32, i32) {
    %c0_i32 = arith.constant 0 : i32
    %c0_i32_0 = arith.constant 0 : i32
    return %arg0, %c0_i32 : i32, i32
  }
  func.func @transform_9(%arg0: i32) -> (i32, i32, i32) {
    %c0_i32 = arith.constant 0 : i32
    %c0_i32_0 = arith.constant 0 : i32
    %c0_i32_1 = arith.constant 0 : i32
    return %arg0, %c0_i32, %c0_i32_0 : i32, i32, i32
  }
}

</mosaic_0001>

<llo_original>
// kernel: tpu_custom_call.1
$region0: #{tpu_custom_call.1}
  #allocation0 [shape = 'u32[]', space=smem, size = 0x4, offset = 0x4, fixed_abs, tag = 'smem constant byte address 0x4 - core index']
  #allocation1 [shape = 'u32[144,128]{1,0:T(1,128)}', space=vmem, size = 0x12000, scoped, tag = 'internal scratch']
  %s0 = inlined_call_operand.vmem [shape: f32[8,128], index: 0, kind: input, shape index: {}]
  %s1 = inlined_call_operand.hbm [shape: bf16[128,128], index: 1, kind: input, shape index: {}]
  %s2 = inlined_call_operand.vmem [shape: f32[1,128], index: 2, kind: input, shape index: {}]
  %s3 = inlined_call_operand.hbm [shape: bf16[128,128], index: 3, kind: input, shape index: {}]
  %s4 = inlined_call_operand.vmem [shape: f32[1,128], index: 4, kind: input, shape index: {}]
  %s5 = inlined_call_operand.hbm [shape: bf16[128,128], index: 5, kind: input, shape index: {}]
  %s6 = inlined_call_operand.vmem [shape: f32[1,128], index: 6, kind: input, shape index: {}]
  %s7 = inlined_call_operand.vmem [shape: s32[8,1], index: 7, kind: input, shape index: {}]
  %s8 = inlined_call_operand.hbm [shape: f32[8,128], index: 8, kind: output, shape index: {0}]
  %s9 = inlined_call_operand.hbm [shape: f32[1,8,128], index: 9, kind: output, shape index: {1}]
  %10 = xla_tuple %s8, %s9
  %s11 = sld [smem:[#allocation0]]
  $region62: #{tpu_custom_call.1} parent=0
    _
  %s13 = ssub.s32 1, %s11
  %s14 = scalar_select 0, %s13, %s11
  $region1: #{tpu_custom_call.1} parent=0
    #allocation2 [shape = 'u8[32768]{0}', space=vmem, size = 0x8000, scoped, tag = 'input window, operand 1, single buffered']
    #allocation3 [shape = 's32[1]{0}', space=sflag, size = 0x4, scoped, tag = 'scoped memory for tpu_custom_call.1']
    #allocation4 [shape = 's32[1]{0}', space=sflag, size = 0x4, scoped, tag = 'scoped memory for tpu_custom_call.1']
    #allocation5 [shape = 'u8[32768]{0}', space=vmem, size = 0x8000, scoped, tag = 'input window, operand 3, single buffered']
    #allocation6 [shape = 's32[1]{0}', space=sflag, size = 0x4, scoped, tag = 'scoped memory for tpu_custom_call.1']
    #allocation7 [shape = 'u8[32768]{0}', space=vmem, size = 0x8000, scoped, tag = 'input window, operand 5, single buffered']
    #allocation8 [shape = 'u8[4096]{0}', space=vmem, size = 0x1000, scoped, tag = 'output window, operand 0, single buffered']
    #allocation9 [shape = 'u8[4096]{0}', space=vmem, size = 0x1000, scoped, tag = 'output window, operand 1, single buffered']
    #allocation10 [shape = 's32[1]{0}', space=sflag, size = 0x4, scoped, tag = 'scoped memory for tpu_custom_call.1']
    %15 = vsyncpa [#allocation3], 0
    %16 = vsyncpa [#allocation6], 0
    %17 = vsyncpa [#allocation4], 0
    %18 = vsyncpa [#allocation10], 0
    // Predicated region
    $region2: #{tpu_custom_call.1} parent=1 // pred_check
      _
    $region3: #{tpu_custom_call.1} parent=1 // pred_check_branch
      %20 = sbr.rel (0) target = $region5
    $region4: #{tpu_custom_call.1} parent=1 // pred_region
      _
    $region5: #{tpu_custom_call.1} parent=1 // pred_fallthru
      _
    // Predicated region
    $region6: #{tpu_custom_call.1} parent=1 // pred_check
      _
    $region7: #{tpu_custom_call.1} parent=1 // pred_check_branch
      %22 = sbr.rel (0) target = $region9
    $region8: #{tpu_custom_call.1} parent=1 // pred_region
      %s24 = ssub.s32 1024, 1024
      %25 = vsyncadd [#allocation3], %s24
      %s26 = sshll.u32 [#allocation2], 4
      %s27 = int_to_ptr.vmem [resolvable:$true] %s26
      %32 = dma.hbm_to_vmem [thread:$0]  %s1, 1024, %s27, [#allocation3], 64, 64, 4
    $region9: #{tpu_custom_call.1} parent=1 // pred_fallthru
      _
    // Predicated region
    $region10: #{tpu_custom_call.1} parent=1 // pred_check
      _
    $region11: #{tpu_custom_call.1} parent=1 // pred_check_branch
      %34 = sbr.rel (0) target = $region13
    $region12: #{tpu_custom_call.1} parent=1 // pred_region
      _
    $region13: #{tpu_custom_call.1} parent=1 // pred_fallthru
      _
    // Predicated region
    $region14: #{tpu_custom_call.1} parent=1 // pred_check
      _
    $region15: #{tpu_custom_call.1} parent=1 // pred_check_branch
      %36 = sbr.rel (0) target = $region17
    $region16: #{tpu_custom_call.1} parent=1 // pred_region
      %s38 = ssub.s32 1024, 1024
      %39 = vsyncadd [#allocation6], %s38
      %s40 = sshll.u32 [#allocation5], 4
      %s41 = int_to_ptr.vmem [resolvable:$true] %s40
      %46 = dma.hbm_to_vmem [thread:$0]  %s3, 1024, %s41, [#allocation6], 64, 64, 4
    $region17: #{tpu_custom_call.1} parent=1 // pred_fallthru
      _
    // Predicated region
    $region18: #{tpu_custom_call.1} parent=1 // pred_check
      _
    $region19: #{tpu_custom_call.1} parent=1 // pred_check_branch
      %48 = sbr.rel (0) target = $region21
    $region20: #{tpu_custom_call.1} parent=1 // pred_region
      _
    $region21: #{tpu_custom_call.1} parent=1 // pred_fallthru
      _
    // Predicated region
    $region22: #{tpu_custom_call.1} parent=1 // pred_check
      _
    $region23: #{tpu_custom_call.1} parent=1 // pred_check_branch
      %50 = sbr.rel (0) target = $region25
    $region24: #{tpu_custom_call.1} parent=1 // pred_region
      %s52 = ssub.s32 1024, 1024
      %53 = vsyncadd [#allocation6], %s52
      %s54 = sshll.u32 [#allocation7], 4
      %s55 = int_to_ptr.vmem [resolvable:$true] %s54
      %60 = dma.hbm_to_vmem [thread:$0]  %s5, 1024, %s55, [#allocation6], 64, 64, 4
    $region25: #{tpu_custom_call.1} parent=1 // pred_fallthru
      _
    // Predicated region
    $region26: #{tpu_custom_call.1} parent=1 // pred_check
      _
    $region27: #{tpu_custom_call.1} parent=1 // pred_check_branch
      %62 = sbr.rel (0) target = $region29
    $region28: #{tpu_custom_call.1} parent=1 // pred_region
      _
    $region29: #{tpu_custom_call.1} parent=1 // pred_fallthru
      _
    // Predicated region
    $region30: #{tpu_custom_call.1} parent=1 // pred_check
      _
    $region31: #{tpu_custom_call.1} parent=1 // pred_check_branch
      %64 = sbr.rel (0) target = $region33
    $region32: #{tpu_custom_call.1} parent=1 // pred_region
      _
    $region33: #{tpu_custom_call.1} parent=1 // pred_fallthru
      _
    // Predicated region
    $region34: #{tpu_custom_call.1} parent=1 // pred_check
      _
    $region35: #{tpu_custom_call.1} parent=1 // pred_check_branch
      %66 = sbr.rel (0) target = $region37
    $region36: #{tpu_custom_call.1} parent=1 // pred_region
      %67 = dma.done [#allocation3], 1024
    $region37: #{tpu_custom_call.1} parent=1 // pred_fallthru
      _
    // Predicated region
    $region38: #{tpu_custom_call.1} parent=1 // pred_check
      _
    $region39: #{tpu_custom_call.1} parent=1 // pred_check_branch
      %69 = sbr.rel (0) target = $region41
    $region40: #{tpu_custom_call.1} parent=1 // pred_region
      %70 = dma.done [#allocation6], 1024
    $region41: #{tpu_custom_call.1} parent=1 // pred_fallthru
      _
    // Predicated region
    $region42: #{tpu_custom_call.1} parent=1 // pred_check
      _
    $region43: #{tpu_custom_call.1} parent=1 // pred_check_branch
      %72 = sbr.rel (0) target = $region45
    $region44: #{tpu_custom_call.1} parent=1 // pred_region
      %73 = dma.done [#allocation6], 1024
    $region45: #{tpu_custom_call.1} parent=1 // pred_fallthru
      _
    %v75 = vld [vmem:[%s0] sm:$0xff]
    %v76 = vpack.c.bf16 %v75, %v75
    %v77 = vld [vmem:[#allocation2] sm:$0xf]
    %v78 = vld [vmem:[#allocation2 + $0x4] sm:$0xf]
    %v79 = vld [vmem:[#allocation2 + $0x8] sm:$0xf]
    %v80 = vld [vmem:[#allocation2 + $0xc] sm:$0xf]
    %v81 = vld [vmem:[#allocation2 + $0x10] sm:$0xf]
    %v82 = vld [vmem:[#allocation2 + $0x14] sm:$0xf]
    %v83 = vld [vmem:[#allocation2 + $0x18] sm:$0xf]
    %v84 = vld [vmem:[#allocation2 + $0x1c] sm:$0xf]
    %v85 = vld [vmem:[#allocation2 + $0x20] sm:$0xf]
    %v86 = vld [vmem:[#allocation2 + $0x24] sm:$0xf]
    %v87 = vld [vmem:[#allocation2 + $0x28] sm:$0xf]
    %v88 = vld [vmem:[#allocation2 + $0x2c] sm:$0xf]
    %v89 = vld [vmem:[#allocation2 + $0x30] sm:$0xf]
    %v90 = vld [vmem:[#allocation2 + $0x34] sm:$0xf]
    %v91 = vld [vmem:[#allocation2 + $0x38] sm:$0xf]
    %v92 = vld [vmem:[#allocation2 + $0x3c] sm:$0xf]
    %v93 = vld [vmem:[%s2] sm:$0x1]
    %v95 = vlaneseq
    %v96 = vshrl.u32 %v95, 7
    %v97 = vsub.s32 0, %v96
    %v98 = vrot.slane %v93, %v97
    %v116 = vunpack.c.l.b16 %v77
    %v117 = vunpack.c.l.b16 %v78
    %v118 = vunpack.c.l.b16 %v79
    %v119 = vunpack.c.l.b16 %v80
    %v120 = vunpack.c.l.b16 %v81
    %v121 = vunpack.c.l.b16 %v82
    %v122 = vunpack.c.l.b16 %v83
    %v123 = vunpack.c.l.b16 %v84
    %v124 = vunpack.c.l.b16 %v85
    %v125 = vunpack.c.l.b16 %v86
    %v126 = vunpack.c.l.b16 %v87
    %v127 = vunpack.c.l.b16 %v88
    %v128 = vunpack.c.l.b16 %v89
    %v129 = vunpack.c.l.b16 %v90
    %v130 = vunpack.c.l.b16 %v91
    %v131 = vunpack.c.l.b16 %v92
    %v132 = vpack.c.b16 %v117, %v116
    %v133 = vpack.c.b16 %v119, %v118
    %v134 = vpack.c.b16 %v121, %v120
    %v135 = vpack.c.b16 %v123, %v122
    %v136 = vpack.c.b16 %v125, %v124
    %v137 = vpack.c.b16 %v127, %v126
    %v138 = vpack.c.b16 %v129, %v128
    %v139 = vpack.c.b16 %v131, %v130
    %148 = vmatprep.subr.bf16.mxu0 0
    %149 = vmatpush1.bf16.msra.mxu0 %v139
    %150 = vmatprep.subr.bf16.mxu0 0
    %151 = vmatpush1.bf16.msra.mxu0 %v138
    %152 = vmatprep.subr.bf16.mxu0 0
    %153 = vmatpush1.bf16.msra.mxu0 %v137
    %154 = vmatprep.subr.bf16.mxu0 0
    %155 = vmatpush1.bf16.msra.mxu0 %v136
    %156 = vmatprep.subr.bf16.mxu0 0
    %157 = vmatpush1.bf16.msra.mxu0 %v135
    %158 = vmatprep.subr.bf16.mxu0 0
    %159 = vmatpush1.bf16.msra.mxu0 %v134
    %160 = vmatprep.subr.bf16.mxu0 0
    %161 = vmatpush1.bf16.msra.mxu0 %v133
    %162 = vmatprep.subr.bf16.mxu0 0
    %163 = vmatpush1.bf16.msra.mxu0 %v132
    %164 = vmatprep.subr.bf16.mxu0 0
    %165 = vmatpush2.bf16.msra.mxu0 0
    %166 = vmatprep.subr.bf16.mxu0 0
    %167 = vmatpush2.bf16.msra.mxu0 0
    %168 = vmatprep.subr.bf16.mxu0 0
    %169 = vmatpush2.bf16.msra.mxu0 0
    %170 = vmatprep.subr.bf16.mxu0 0
    %171 = vmatpush2.bf16.msra.mxu0 0
    %172 = vmatprep.subr.bf16.mxu0 0
    %173 = vmatpush2.bf16.msra.mxu0 0
    %174 = vmatprep.subr.bf16.mxu0 0
    %175 = vmatpush2.bf16.msra.mxu0 0
    %176 = vmatprep.subr.bf16.mxu0 0
    %177 = vmatpush2.bf16.msra.mxu0 0
    %178 = vmatprep.subr.bf16.mxu0 0
    %179 = vmatpush2.bf16.msra.mxu0 0
    %180 = vmatprep.mubr.bf16.mxu0 0
    %181 = vmatmul.mubr.bf16.gmra.mxu0 %v76
    %v182 = vpop.f32.mrf.mxu0
    %v183 = vadd.f32 %v98, %v182
    %v184 = vpop.f32.mrf.mxu0
    %v185 = vpop.f32.mrf.mxu0
    %v186 = vpop.f32.mrf.mxu0
    %187 = vdwg.mxu0
    %v188 = vmax.f32 %v183, 0.0
    %v189 = vpack.c.bf16 %v188, %v188
    %v190 = vld [vmem:[#allocation5] sm:$0xf]
    %v191 = vld [vmem:[#allocation5 + $0x4] sm:$0xf]
    %v192 = vld [vmem:[#allocation5 + $0x8] sm:$0xf]
    %v193 = vld [vmem:[#allocation5 + $0xc] sm:$0xf]
    %v194 = vld [vmem:[#allocation5 + $0x10] sm:$0xf]
    %v195 = vld [vmem:[#allocation5 + $0x14] sm:$0xf]
    %v196 = vld [vmem:[#allocation5 + $0x18] sm:$0xf]
    %v197 = vld [vmem:[#allocation5 + $0x1c] sm:$0xf]
    %v198 = vld [vmem:[#allocation5 + $0x20] sm:$0xf]
    %v199 = vld [vmem:[#allocation5 + $0x24] sm:$0xf]
    %v200 = vld [vmem:[#allocation5 + $0x28] sm:$0xf]
    %v201 = vld [vmem:[#allocation5 + $0x2c] sm:$0xf]
    %v202 = vld [vmem:[#allocation5 + $0x30] sm:$0xf]
    %v203 = vld [vmem:[#allocation5 + $0x34] sm:$0xf]
    %v204 = vld [vmem:[#allocation5 + $0x38] sm:$0xf]
    %v205 = vld [vmem:[#allocation5 + $0x3c] sm:$0xf]
    %v206 = vld [vmem:[%s4] sm:$0x1]
    %v208 = vlaneseq
    %v209 = vshrl.u32 %v208, 7
    %v210 = vsub.s32 0, %v209
    %v211 = vrot.slane %v206, %v210
    %v229 = vunpack.c.l.b16 %v190
    %v230 = vunpack.c.l.b16 %v191
    %v231 = vunpack.c.l.b16 %v192
    %v232 = vunpack.c.l.b16 %v193
    %v233 = vunpack.c.l.b16 %v194
    %v234 = vunpack.c.l.b16 %v195
    %v235 = vunpack.c.l.b16 %v196
    %v236 = vunpack.c.l.b16 %v197
    %v237 = vunpack.c.l.b16 %v198
    %v238 = vunpack.c.l.b16 %v199
    %v239 = vunpack.c.l.b16 %v200
    %v240 = vunpack.c.l.b16 %v201
    %v241 = vunpack.c.l.b16 %v202
    %v242 = vunpack.c.l.b16 %v203
    %v243 = vunpack.c.l.b16 %v204
    %v244 = vunpack.c.l.b16 %v205
    %v245 = vpack.c.b16 %v230, %v229
    %v246 = vpack.c.b16 %v232, %v231
    %v247 = vpack.c.b16 %v234, %v233
    %v248 = vpack.c.b16 %v236, %v235
    %v249 = vpack.c.b16 %v238, %v237
    %v250 = vpack.c.b16 %v240, %v239
    %v251 = vpack.c.b16 %v242, %v241
    %v252 = vpack.c.b16 %v244, %v243
    %261 = vmatprep.subr.bf16.mxu0 0
    %262 = vmatpush1.bf16.msra.mxu0 %v252
    %263 = vmatprep.subr.bf16.mxu0 0
    %264 = vmatpush1.bf16.msra.mxu0 %v251
    %265 = vmatprep.subr.bf16.mxu0 0
    %266 = vmatpush1.bf16.msra.mxu0 %v250
    %267 = vmatprep.subr.bf16.mxu0 0
    %268 = vmatpush1.bf16.msra.mxu0 %v249
    %269 = vmatprep.subr.bf16.mxu0 0
    %270 = vmatpush1.bf16.msra.mxu0 %v248
    %271 = vmatprep.subr.bf16.mxu0 0
    %272 = vmatpush1.bf16.msra.mxu0 %v247
    %273 = vmatprep.subr.bf16.mxu0 0
    %274 = vmatpush1.bf16.msra.mxu0 %v246
    %275 = vmatprep.subr.bf16.mxu0 0
    %276 = vmatpush1.bf16.msra.mxu0 %v245
    %277 = vmatprep.subr.bf16.mxu0 0
    %278 = vmatpush2.bf16.msra.mxu0 0
    %279 = vmatprep.subr.bf16.mxu0 0
    %280 = vmatpush2.bf16.msra.mxu0 0
    %281 = vmatprep.subr.bf16.mxu0 0
    %282 = vmatpush2.bf16.msra.mxu0 0
    %283 = vmatprep.subr.bf16.mxu0 0
    %284 = vmatpush2.bf16.msra.mxu0 0
    %285 = vmatprep.subr.bf16.mxu0 0
    %286 = vmatpush2.bf16.msra.mxu0 0
    %287 = vmatprep.subr.bf16.mxu0 0
    %288 = vmatpush2.bf16.msra.mxu0 0
    %289 = vmatprep.subr.bf16.mxu0 0
    %290 = vmatpush2.bf16.msra.mxu0 0
    %291 = vmatprep.subr.bf16.mxu0 0
    %292 = vmatpush2.bf16.msra.mxu0 0
    %293 = vmatprep.mubr.bf16.mxu0 0
    %294 = vmatmul.mubr.bf16.gmra.mxu0 %v189
    %v295 = vpop.f32.mrf.mxu0
    %v296 = vadd.f32 %v211, %v295
    %v297 = vpop.f32.mrf.mxu0
    %v298 = vpop.f32.mrf.mxu0
    %v299 = vpop.f32.mrf.mxu0
    %300 = vdwg.mxu0
    %v301 = vmax.f32 %v296, 0.0
    %v302 = vpack.c.bf16 %v301, %v301
    %v303 = vld [vmem:[#allocation7] sm:$0xf]
    %v304 = vld [vmem:[#allocation7 + $0x4] sm:$0xf]
    %v305 = vld [vmem:[#allocation7 + $0x8] sm:$0xf]
    %v306 = vld [vmem:[#allocation7 + $0xc] sm:$0xf]
    %v307 = vld [vmem:[#allocation7 + $0x10] sm:$0xf]
    %v308 = vld [vmem:[#allocation7 + $0x14] sm:$0xf]
    %v309 = vld [vmem:[#allocation7 + $0x18] sm:$0xf]
    %v310 = vld [vmem:[#allocation7 + $0x1c] sm:$0xf]
    %v311 = vld [vmem:[#allocation7 + $0x20] sm:$0xf]
    %v312 = vld [vmem:[#allocation7 + $0x24] sm:$0xf]
    %v313 = vld [vmem:[#allocation7 + $0x28] sm:$0xf]
    %v314 = vld [vmem:[#allocation7 + $0x2c] sm:$0xf]
    %v315 = vld [vmem:[#allocation7 + $0x30] sm:$0xf]
    %v316 = vld [vmem:[#allocation7 + $0x34] sm:$0xf]
    %v317 = vld [vmem:[#allocation7 + $0x38] sm:$0xf]
    %v318 = vld [vmem:[#allocation7 + $0x3c] sm:$0xf]
    %v319 = vld [vmem:[%s6] sm:$0x1]
    %v321 = vlaneseq
    %v322 = vshrl.u32 %v321, 7
    %v323 = vsub.s32 0, %v322
    %v324 = vrot.slane %v319, %v323
    %v342 = vunpack.c.l.b16 %v303
    %v343 = vunpack.c.l.b16 %v304
    %v344 = vunpack.c.l.b16 %v305
    %v345 = vunpack.c.l.b16 %v306
    %v346 = vunpack.c.l.b16 %v307
    %v347 = vunpack.c.l.b16 %v308
    %v348 = vunpack.c.l.b16 %v309
    %v349 = vunpack.c.l.b16 %v310
    %v350 = vunpack.c.l.b16 %v311
    %v351 = vunpack.c.l.b16 %v312
    %v352 = vunpack.c.l.b16 %v313
    %v353 = vunpack.c.l.b16 %v314
    %v354 = vunpack.c.l.b16 %v315
    %v355 = vunpack.c.l.b16 %v316
    %v356 = vunpack.c.l.b16 %v317
    %v357 = vunpack.c.l.b16 %v318
    %v358 = vpack.c.b16 %v343, %v342
    %v359 = vpack.c.b16 %v345, %v344
    %v360 = vpack.c.b16 %v347, %v346
    %v361 = vpack.c.b16 %v349, %v348
    %v362 = vpack.c.b16 %v351, %v350
    %v363 = vpack.c.b16 %v353, %v352
    %v364 = vpack.c.b16 %v355, %v354
    %v365 = vpack.c.b16 %v357, %v356
    %374 = vmatprep.subr.bf16.mxu0 0
    %375 = vmatpush1.bf16.msra.mxu0 %v365
    %376 = vmatprep.subr.bf16.mxu0 0
    %377 = vmatpush1.bf16.msra.mxu0 %v364
    %378 = vmatprep.subr.bf16.mxu0 0
    %379 = vmatpush1.bf16.msra.mxu0 %v363
    %380 = vmatprep.subr.bf16.mxu0 0
    %381 = vmatpush1.bf16.msra.mxu0 %v362
    %382 = vmatprep.subr.bf16.mxu0 0
    %383 = vmatpush1.bf16.msra.mxu0 %v361
    %384 = vmatprep.subr.bf16.mxu0 0
    %385 = vmatpush1.bf16.msra.mxu0 %v360
    %386 = vmatprep.subr.bf16.mxu0 0
    %387 = vmatpush1.bf16.msra.mxu0 %v359
    %388 = vmatprep.subr.bf16.mxu0 0
    %389 = vmatpush1.bf16.msra.mxu0 %v358
    %390 = vmatprep.subr.bf16.mxu0 0
    %391 = vmatpush2.bf16.msra.mxu0 0
    %392 = vmatprep.subr.bf16.mxu0 0
    %393 = vmatpush2.bf16.msra.mxu0 0
    %394 = vmatprep.subr.bf16.mxu0 0
    %395 = vmatpush2.bf16.msra.mxu0 0
    %396 = vmatprep.subr.bf16.mxu0 0
    %397 = vmatpush2.bf16.msra.mxu0 0
    %398 = vmatprep.subr.bf16.mxu0 0
    %399 = vmatpush2.bf16.msra.mxu0 0
    %400 = vmatprep.subr.bf16.mxu0 0
    %401 = vmatpush2.bf16.msra.mxu0 0
    %402 = vmatprep.subr.bf16.mxu0 0
    %403 = vmatpush2.bf16.msra.mxu0 0
    %404 = vmatprep.subr.bf16.mxu0 0
    %405 = vmatpush2.bf16.msra.mxu0 0
    %406 = vmatprep.mubr.bf16.mxu0 0
    %407 = vmatmul.mubr.bf16.gmra.mxu0 %v302
    %v408 = vpop.f32.mrf.mxu0
    %v409 = vadd.f32 %v324, %v408
    %v410 = vpop.f32.mrf.mxu0
    %v411 = vpop.f32.mrf.mxu0
    %v412 = vpop.f32.mrf.mxu0
    %413 = vdwg.mxu0
    %v414 = vlaneseq
    %v415 = vand.u32 %v414, 127
    %vm416 = vcmp.lt.s32.totalorder %v415, 16
    %v417 = vsel %vm416, %v409, -1e+30
    %418 = vmax.xlane.f32.xlu0 %v417
    %v419 = vpop.xlane.xlu0 %418
    %v420 = vsub.f32 %v417, %v419
    %v421 = vmul.f32 %v420, 1.442695
    %v422 = vpow.pop %v421
    %v423 = vsel %vm416, %v422, 0.0
    %424 = vadd.xlane.f32.xlu0 %v423
    %v425 = vpop.xlane.xlu0 %424
    %v426 = vlog2.pop %v425
    %v427 = vmul.f32 %v426, 0.6931472
    %v428 = vsub.f32 %v420, %v427
    %vm429 = vcmp.eq.f32.partialorder %v417, %v419
    %vm430 = vmand %vm429, %vm416
    %v431 = vsel %vm430, %v415, 128
    %v432 = vand.u32 %v431, 65535
    %v433 = vshra.s32 %v431, 16
    %v434 = vcvt.s32.f32 %v432
    %v435 = vcvt.s32.f32 %v433
    %436 = vmin.xlane.f32.xlu0 %v435
    %v437 = vpop.xlane.xlu0 %436
    %vm438 = vcmp.eq.f32.partialorder %v435, %v437
    %v439 = vsel %vm438, %v434, inf
    %440 = vmin.xlane.f32.xlu0 %v439
    %v441 = vpop.xlane.xlu0 %440
    %v442 = vcvt.f32.s32 %v441
    %v443 = vcvt.f32.s32 %v437
    %v444 = vshll.u32 %v443, 16
    %v445 = vadd.s32 %v444, %v442
    %v446 = vld [vmem:[%s7] sm:$0xff]
    %447 = vset.pattern.permute.xlu0 0
    %448 = vperm.xlu0 %447, %v446
    %v449 = vpop.permute.xlu0 %448
    %vm450 = vcmp.eq.s32.totalorder %v415, %v449
    %v451 = vsel %vm450, 1, 0
    %v452 = vcvt.s32.f32 %v451
    %v453 = vsel %vm416, %v428, 0.0
    %v454 = vmul.f32 %v453, %v452
    %455 = vadd.xlane.f32.xlu0 %v454
    %v456 = vpop.xlane.xlu0 %455
    %v457 = vrot.slane %v456, 4
    %v458 = vadd.f32 %v456, %v457
    %v459 = vrot.slane %v458, 2
    %v460 = vadd.f32 %v458, %v459
    %v461 = vrot.slane %v460, 1
    %v462 = vadd.f32 %v460, %v461
    %s463 = vtos %v462
    %s464 = ssub.f32 0.0, %s463
    %vm465 = vcmp.ne.s32.totalorder %v445, %v446
    %v466 = vsel %vm465, 1, 0
    %v467 = vcvt.s32.f32 %v466
    %vm468 = vcmask 7168
    %v469 = vsel %vm468, %v467, 0.0
    %470 = vadd.xlane.f32.xlu0 %v469
    %v471 = vpop.xlane.xlu0 %470
    %v472 = vrot.slane %v471, 4
    %v473 = vadd.f32 %v471, %v472
    %v474 = vrot.slane %v473, 2
    %v475 = vadd.f32 %v473, %v474
    %v476 = vrot.slane %v475, 1
    %v477 = vadd.f32 %v475, %v476
    %s478 = vtos %v477
    %vm480 = vcmp.eq.s32.totalorder %v415, 16
    %v481 = vsel %vm480, %v445, %v453
    %482 = vst [vmem:[#allocation8] sm:$0xff] %v481
    %vm483 = vcmp.eq.s32.totalorder %v415, 0
    %vm484 = vcmp.eq.s32.totalorder %v415, 1
    %v485 = vstv %s478
    %v486 = vsel %vm484, %v485, 0.0
    %v487 = vstv %s464
    %v488 = vsel %vm483, %v487, %v486
    %489 = vst [vmem:[#allocation9] sm:$0xff] %v488
    // Predicated region
    $region46: #{tpu_custom_call.1} parent=1 // pred_check
      _
    $region47: #{tpu_custom_call.1} parent=1 // pred_check_branch
      %491 = sbr.rel (0) target = $region49
    $region48: #{tpu_custom_call.1} parent=1 // pred_region
      %s493 = ssub.s32 128, 128
      %494 = vsyncadd [#allocation4], %s493
      %s496 = sshll.u32 [#allocation8], 4
      %s497 = int_to_ptr.vmem [resolvable:$true] %s496
      %499 = dma.vmem_to_hbm [thread:$0]  %s497, 128, %s8, [#allocation4]
    $region49: #{tpu_custom_call.1} parent=1 // pred_fallthru
      _
    // Predicated region
    $region50: #{tpu_custom_call.1} parent=1 // pred_check
      _
    $region51: #{tpu_custom_call.1} parent=1 // pred_check_branch
      %501 = sbr.rel (0) target = $region53
    $region52: #{tpu_custom_call.1} parent=1 // pred_region
      %s503 = ssub.s32 128, 128
      %504 = vsyncadd [#allocation10], %s503
      %s506 = sshll.u32 [#allocation9], 4
      %s507 = int_to_ptr.vmem [resolvable:$true] %s506
      %509 = dma.vmem_to_hbm [thread:$0]  %s507, 128, %s9, [#allocation10]
    $region53: #{tpu_custom_call.1} parent=1 // pred_fallthru
      _
    // Predicated region
    $region54: #{tpu_custom_call.1} parent=1 // pred_check
      _
    $region55: #{tpu_custom_call.1} parent=1 // pred_check_branch
      %511 = sbr.rel (0) target = $region57
    $region56: #{tpu_custom_call.1} parent=1 // pred_region
      %512 = dma.done [#allocation4], 128
    $region57: #{tpu_custom_call.1} parent=1 // pred_fallthru
      _
    // Predicated region
    $region58: #{tpu_custom_call.1} parent=1 // pred_check
      _
    $region59: #{tpu_custom_call.1} parent=1 // pred_check_branch
      %514 = sbr.rel (0) target = $region61
    $region60: #{tpu_custom_call.1} parent=1 // pred_region
      %515 = dma.done [#allocation10], 128
    $region61: #{tpu_custom_call.1} parent=1 // pred_fallthru
      _
    %516 = vsyncpa [#allocation3], 1
    %517 = vsyncpa [#allocation6], 1
    %518 = vsyncpa [#allocation4], 1
    %519 = vsyncpa [#allocation10], 1

</llo_original>
